<compile_context>
chip_gen: v6e
topology: v6e:2x2x1
jax: 0.10.0
libtpu: 0.0.40
codegen_flags: <defaults>
</compile_context>

<pallas_src>
import functools

import jax
import jax.numpy as jnp
from jax.experimental import pallas as pl
from jax.experimental.pallas import tpu as pltpu


def _pick_tile(dim, target, align):
    """Tile size: the full dim if it already fits under `target` (always a
    legal block), otherwise the largest multiple of `align` <= target."""
    if dim <= target:
        return dim
    return max((target // align) * align, align)


def _linear_relu_fused_kernel(x_ref, w_ref, b_ref, o_ref):
    # Full K resident: one MXU matmul per (N-panel, M-tile), fused bias+ReLU.
    acc = jnp.dot(x_ref[...], w_ref[...], preferred_element_type=jnp.float32)
    o_ref[...] = jnp.maximum(acc + b_ref[...], 0.0).astype(o_ref.dtype)


def _linear_relu_acc_kernel(x_ref, w_ref, b_ref, o_ref, acc_ref):
    # Fallback for very large K: 3-D grid, K innermost ("arbitrary"),
    # f32 VMEM accumulator.  First K-step writes the dot result directly
    # (no zero-init + add).
    k = pl.program_id(2)
    prod = jnp.dot(x_ref[...], w_ref[...], preferred_element_type=jnp.float32)

    @pl.when(k == 0)
    def _first():
        acc_ref[...] = prod

    @pl.when(k > 0)
    def _accum():
        acc_ref[...] += prod

    @pl.when(k == pl.num_programs(2) - 1)
    def _finalize():
        out = acc_ref[...] + b_ref[...]
        o_ref[...] = jnp.maximum(out, 0.0).astype(o_ref.dtype)


def prepare_mamba_block_params(weight, bias, compute_dtype=jnp.bfloat16):
    """One-time (parameter-load-time) layout prep -- hoisted out of forward.

    weight: [hidden_dim, input_dim]  (PyTorch Linear layout)
    bias:   [hidden_dim]
    Returns (w2d [K, N] in compute_dtype, b2d [1, N] float32).
    """
    w2d = jnp.asarray(weight).T.astype(compute_dtype)          # (K, N)
    b2d = jnp.asarray(bias).astype(jnp.float32).reshape(1, -1)  # (1, N)
    return w2d, b2d


@functools.partial(jax.jit,
                   static_argnames=("tm", "tn", "tk", "vmem_budget_bytes"))
def mamba_block_forward(x, w2d, b2d, *, tm=512, tn=512, tk=1024,
                        vmem_budget_bytes=24 << 20):
    """relu(x @ W.T + b) with W/b pre-laid-out by prepare_mamba_block_params."""
    K = x.shape[-1]
    Kw, N = w2d.shape
    assert Kw == K, "weight/input dim mismatch"
    lead_shape = x.shape[:-1]
    out_dtype = x.dtype
    cdtype = w2d.dtype

    x2d = x.reshape(-1, K).astype(cdtype)
    M = x2d.shape[0]

    in_bytes = jnp.dtype(cdtype).itemsize
    out_bytes = jnp.dtype(out_dtype).itemsize

    tm_eff = _pick_tile(M, tm, 8)
    tn_eff = _pick_tile(N, tn, 128)
    grid_nm = (pl.cdiv(N, tn_eff), pl.cdiv(M, tm_eff))

    # Double-buffered footprint of the full-K-resident (fused) path.
    fused_bytes = 2 * (tm_eff * K * in_bytes          # x block
                       + K * tn_eff * in_bytes        # W panel
                       + tm_eff * tn_eff * out_bytes  # out block
                       + tn_eff * 4)                  # bias

    if fused_bytes <= vmem_budget_bytes:
        # ---- Primary path: K collapsed, 2-D grid (N panels outer, M inner).
        # W panel + bias are resident across the inner M axis (read from HBM
        # once); only x row-tiles stream.  No padding anywhere.
        vmem_limit = min(max(fused_bytes + (8 << 20), 16 << 20), 48 << 20)
        out = pl.pallas_call(
            _linear_relu_fused_kernel,
            out_shape=jax.ShapeDtypeStruct((M, N), out_dtype),
            grid_spec=pltpu.PrefetchScalarGridSpec(
                num_scalar_prefetch=0,
                grid=grid_nm,
                in_specs=[
                    pl.BlockSpec((tm_eff, K), lambda j, i: (i, 0)),
                    pl.BlockSpec((K, tn_eff), lambda j, i: (0, j)),
                    pl.BlockSpec((1, tn_eff), lambda j, i: (0, j)),
                ],
                out_specs=pl.BlockSpec((tm_eff, tn_eff), lambda j, i: (i, j)),
            ),
            compiler_params=pltpu.CompilerParams(
                dimension_semantics=("parallel", "parallel"),
                vmem_limit_bytes=vmem_limit,
            ),
        )(x2d, w2d, b2d)
    else:
        # ---- Fallback: very large K.  3-D grid with f32 accumulator.
        # Only K is zero-padded (required for reduction correctness); M/N
        # edge blocks never reach HBM so they stay unpadded.
        tk_eff = _pick_tile(K, tk, 128)
        k_blocks = pl.cdiv(K, tk_eff)
        K_pad = k_blocks * tk_eff
        w_in = w2d
        if K_pad != K:
            x2d = jnp.pad(x2d, ((0, 0), (0, K_pad - K)))
            w_in = jnp.pad(w2d, ((0, K_pad - K), (0, 0)))

        step_bytes = (2 * (tm_eff * tk_eff * in_bytes
                           + tk_eff * tn_eff * in_bytes
                           + tm_eff * tn_eff * out_bytes
                           + tn_eff * 4)
                      + tm_eff * tn_eff * 4)          # acc scratch
        vmem_limit = min(max(step_bytes + (8 << 20), 16 << 20), 48 << 20)

        out = pl.pallas_call(
            _linear_relu_acc_kernel,
            out_shape=jax.ShapeDtypeStruct((M, N), out_dtype),
            grid_spec=pltpu.PrefetchScalarGridSpec(
                num_scalar_prefetch=0,
                grid=grid_nm + (k_blocks,),
                in_specs=[
                    pl.BlockSpec((tm_eff, tk_eff), lambda j, i, k: (i, k)),
                    pl.BlockSpec((tk_eff, tn_eff), lambda j, i, k: (k, j)),
                    pl.BlockSpec((1, tn_eff), lambda j, i, k: (0, j)),
                ],
                out_specs=pl.BlockSpec((tm_eff, tn_eff),
                                       lambda j, i, k: (i, j)),
                scratch_shapes=[pltpu.VMEM((tm_eff, tn_eff), jnp.float32)],
            ),
            compiler_params=pltpu.CompilerParams(
                dimension_semantics=("parallel", "parallel", "arbitrary"),
                vmem_limit_bytes=vmem_limit,
            ),
        )(x2d, w_in, b2d)

    return out.reshape(*lead_shape, N)


if __name__ == "__main__":
    # --- Small shapes implied by the module: Linear(input_dim, hidden_dim). ---
    batch, seq, input_dim, hidden_dim = 2, 8, 16, 32

    key = jax.random.PRNGKey(0)
    kx, kw, kb = jax.random.split(key, 3)

    x = jax.random.normal(kx, (batch, seq, input_dim), dtype=jnp.float32)
    bound = 1.0 / (input_dim ** 0.5)
    w_pt = jax.random.uniform(kw, (hidden_dim, input_dim),
                              minval=-bound, maxval=bound, dtype=jnp.float32)
    b_pt = jax.random.uniform(kb, (hidden_dim,),
                              minval=-bound, maxval=bound, dtype=jnp.float32)

    ref = jnp.maximum(jnp.einsum("bsi,hi->bsh", x, w_pt) + b_pt, 0.0)

    # 1) f32 operands: tight-tolerance correctness check of the kernel math.
    w_f32, b_f32 = prepare_mamba_block_params(w_pt, b_pt,
                                              compute_dtype=jnp.float32)
    out_f32 = jax.block_until_ready(mamba_block_forward(x, w_f32, b_f32))
    assert out_f32.shape == (batch, seq, hidden_dim)
    assert jnp.allclose(out_f32, ref, atol=1e-5, rtol=1e-5)

    # 2) bf16 operands (new default): looser tolerance (precision, not a bug).
    w_bf, b_bf = prepare_mamba_block_params(w_pt, b_pt)
    out_bf = jax.block_until_ready(mamba_block_forward(x, w_bf, b_bf))
    assert out_bf.shape == (batch, seq, hidden_dim)
    assert jnp.allclose(out_bf, ref, atol=5e-2, rtol=5e-2)

    # --- Larger, non-multiple shapes: exercises multi-tile edge blocks and
    #     the accumulator fallback path. ---
    batch2, seq2, in2, hid2 = 4, 96, 384, 320
    x2 = jax.random.normal(jax.random.PRNGKey(1), (batch2, seq2, in2),
                           dtype=jnp.float32)
    bound2 = 1.0 / (in2 ** 0.5)
    kw2, kb2 = jax.random.split(jax.random.PRNGKey(2))
    w2 = jax.random.uniform(kw2, (hid2, in2), minval=-bound2, maxval=bound2,
                            dtype=jnp.float32)
    b2 = jax.random.uniform(kb2, (hid2,), minval=-bound2, maxval=bound2,
                            dtype=jnp.float32)
    ref2 = jnp.maximum(
        jnp.einsum("bsi,hi->bsh", x2, w2,
                   precision=jax.lax.Precision.HIGHEST) + b2, 0.0)

    w2_bf, b2_bf = prepare_mamba_block_params(w2, b2)

    # Fused path, single resident panel (default tiles).
    out2 = jax.block_until_ready(mamba_block_forward(x2, w2_bf, b2_bf))
    assert out2.shape == (batch2, seq2, hid2)
    assert jnp.allclose(out2, ref2, atol=5e-2, rtol=5e-2)

    # Fused path with multiple tiles and partial M/N edge blocks.
    out3 = jax.block_until_ready(
        mamba_block_forward(x2, w2_bf, b2_bf, tm=128, tn=128))
    assert jnp.allclose(out3, ref2, atol=5e-2, rtol=5e-2)

    # Accumulator fallback path (forced via tiny VMEM budget): K split into
    # three 128-wide blocks, partial N edge block.
    out4 = jax.block_until_ready(
        mamba_block_forward(x2, w2_bf, b2_bf, tm=128, tn=128, tk=128,
                            vmem_budget_bytes=1))
    assert jnp.allclose(out4, ref2, atol=5e-2, rtol=5e-2)

    print("KERNEL_OK")
</pallas_src>

<mosaic_0001>
module attributes {stable_mosaic.version = 11 : i64} {
  func.func @_linear_relu_fused_kernel(%arg0: i32, %arg1: i32, %arg2: memref<16x16xf32, #tpu.memory_space<vmem>>, %arg3: memref<16x32xf32, #tpu.memory_space<vmem>>, %arg4: memref<1x32xf32, #tpu.memory_space<vmem>>, %arg5: memref<16x32xf32, #tpu.memory_space<vmem>>) attributes {dimension_semantics = [#tpu.dimension_semantics<parallel>, #tpu.dimension_semantics<parallel>], iteration_bounds = array<i64: 1, 1>, scalar_prefetch = 0 : i64, scratch_operands = 0 : i64, tpu.core_type = #tpu.core_type<tc>, window_params = [{transform_indices = @transform_0, window_bounds = array<i64: 16, 16>}, {transform_indices = @transform_1, window_bounds = array<i64: 16, 32>}, {transform_indices = @transform_2, window_bounds = array<i64: 1, 32>}, {transform_indices = @transform_3, window_bounds = array<i64: 16, 32>}]} {
    %c0 = arith.constant 0 : index
    %c0_0 = arith.constant 0 : index
    %0 = vector.load %arg2[%c0, %c0_0] : memref<16x16xf32, #tpu.memory_space<vmem>>, vector<16x16xf32>
    %c0_1 = arith.constant 0 : index
    %c0_2 = arith.constant 0 : index
    %1 = vector.load %arg3[%c0_1, %c0_2] : memref<16x32xf32, #tpu.memory_space<vmem>>, vector<16x32xf32>
    %cst = arith.constant dense<0.000000e+00> : vector<16x32xf32>
    %2 = tpu.matmul %0, %1, %cst {dimension_numbers = #tpu.dot_dimension_numbers<[1], [0], [0], [1], [0, 0, 1, 1], [], []>} : vector<16x16xf32>, vector<16x32xf32>, vector<16x32xf32> -> vector<16x32xf32>
    %c0_3 = arith.constant 0 : index
    %c0_4 = arith.constant 0 : index
    %3 = vector.load %arg4[%c0_3, %c0_4] : memref<1x32xf32, #tpu.memory_space<vmem>>, vector<1x32xf32>
    %4 = vector.broadcast %3 : vector<1x32xf32> to vector<16x32xf32>
    %5 = arith.addf %2, %4 : vector<16x32xf32>
    %cst_5 = arith.constant 0.000000e+00 : f32
    %6 = vector.broadcast %cst_5 : f32 to vector<16x32xf32>
    %7 = arith.maximumf %5, %6 : vector<16x32xf32>
    %c0_6 = arith.constant 0 : index
    %c0_7 = arith.constant 0 : index
    %8 = vector.load %arg5[%c0_6, %c0_7] : memref<16x32xf32, #tpu.memory_space<vmem>>, vector<16x32xf32>
    tpu.vector_store %arg5[%c0_6, %c0_7], %7 {strides = array<i32>} : memref<16x32xf32, #tpu.memory_space<vmem>>, vector<16x32xf32>,
    return
  }
  func.func @transform_0(%arg0: i32, %arg1: i32) -> (i32, i32) {
    %c0_i32 = arith.constant 0 : i32
    %c0_i32_0 = arith.constant 0 : i32
    return %arg1, %c0_i32 : i32, i32
  }
  func.func @transform_1(%arg0: i32, %arg1: i32) -> (i32, i32) {
    %c0_i32 = arith.constant 0 : i32
    %c0_i32_0 = arith.constant 0 : i32
    return %c0_i32, %arg0 : i32, i32
  }
  func.func @transform_2(%arg0: i32, %arg1: i32) -> (i32, i32) {
    %c0_i32 = arith.constant 0 : i32
    %c0_i32_0 = arith.constant 0 : i32
    return %c0_i32, %arg0 : i32, i32
  }
  func.func @transform_3(%arg0: i32, %arg1: i32) -> (i32, i32) {
    %c0_i32 = arith.constant 0 : i32
    return %arg1, %arg0 : i32, i32
  }
}

</mosaic_0001>

<llo_original>
// kernel: mamba_block_forward.1
$region0: #{mamba_block_forward.1}
  #allocation0 [shape = 'u32[]', space=smem, size = 0x4, offset = 0x4, fixed_abs, tag = 'smem constant byte address 0x4 - core index']
  #allocation1 [shape = 'u32[144,128]{1,0:T(1,128)}', space=vmem, size = 0x12000, scoped, tag = 'internal scratch']
  %s0 = inlined_call_operand.hbm [shape: f32[16,16], index: 0, kind: input, shape index: {}]
  %s1 = inlined_call_operand.hbm [shape: f32[16,32], index: 1, kind: input, shape index: {}]
  %s2 = inlined_call_operand.vmem [shape: f32[1,32], index: 2, kind: input, shape index: {}]
  %s3 = inlined_call_operand.hbm [shape: f32[16,32], index: 3, kind: output, shape index: {}]
  %s4 = sld [smem:[#allocation0]]
  $region30: #{mamba_block_forward.1} parent=0
    _
  %s6 = ssub.s32 1, %s4
  %s7 = scalar_select 0, %s6, %s4
  $region1: #{mamba_block_forward.1} parent=0
    #allocation2 [shape = 'u8[8192]{0}', space=vmem, size = 0x2000, scoped, tag = 'input window, operand 0, single buffered']
    #allocation3 [shape = 's32[1]{0}', space=sflag, size = 0x4, scoped, tag = 'scoped memory for mamba_block_forward.1']
    #allocation4 [shape = 's32[1]{0}', space=sflag, size = 0x4, scoped, tag = 'scoped memory for mamba_block_forward.1']
    #allocation5 [shape = 'u8[8192]{0}', space=vmem, size = 0x2000, scoped, tag = 'input window, operand 1, single buffered']
    #allocation6 [shape = 's32[1]{0}', space=sflag, size = 0x4, scoped, tag = 'scoped memory for mamba_block_forward.1']
    #allocation7 [shape = 'u8[8192]{0}', space=vmem, size = 0x2000, scoped, tag = 'output window, operand 0, single buffered']
    %8 = vsyncpa [#allocation3], 0
    %9 = vsyncpa [#allocation6], 0
    %10 = vsyncpa [#allocation4], 0
    // Predicated region
    $region2: #{mamba_block_forward.1} parent=1 // pred_check
      _
    $region3: #{mamba_block_forward.1} parent=1 // pred_check_branch
      %12 = sbr.rel (0) target = $region5
    $region4: #{mamba_block_forward.1} parent=1 // pred_region
      %s14 = ssub.s32 256, 256
      %15 = vsyncadd [#allocation3], %s14
      %s16 = sshll.u32 [#allocation2], 4
      %s17 = int_to_ptr.vmem [resolvable:$true] %s16
      %22 = dma.hbm_to_vmem [thread:$0]  %s0, 256, %s17, [#allocation3], 128, 128, 8
    $region5: #{mamba_block_forward.1} parent=1 // pred_fallthru
      _
    // Predicated region
    $region6: #{mamba_block_forward.1} parent=1 // pred_check
      _
    $region7: #{mamba_block_forward.1} parent=1 // pred_check_branch
      %24 = sbr.rel (0) target = $region9
    $region8: #{mamba_block_forward.1} parent=1 // pred_region
      %s26 = ssub.s32 256, 256
      %27 = vsyncadd [#allocation6], %s26
      %s28 = sshll.u32 [#allocation5], 4
      %s29 = int_to_ptr.vmem [resolvable:$true] %s28
      %34 = dma.hbm_to_vmem [thread:$0]  %s1, 256, %s29, [#allocation6], 128, 128, 8
    $region9: #{mamba_block_forward.1} parent=1 // pred_fallthru
      _
    // Predicated region
    $region10: #{mamba_block_forward.1} parent=1 // pred_check
      _
    $region11: #{mamba_block_forward.1} parent=1 // pred_check_branch
      %36 = sbr.rel (0) target = $region13
    $region12: #{mamba_block_forward.1} parent=1 // pred_region
      _
    $region13: #{mamba_block_forward.1} parent=1 // pred_fallthru
      _
    // Predicated region
    $region14: #{mamba_block_forward.1} parent=1 // pred_check
      _
    $region15: #{mamba_block_forward.1} parent=1 // pred_check_branch
      %38 = sbr.rel (0) target = $region17
    $region16: #{mamba_block_forward.1} parent=1 // pred_region
      %39 = dma.done [#allocation3], 256
    $region17: #{mamba_block_forward.1} parent=1 // pred_fallthru
      _
    // Predicated region
    $region18: #{mamba_block_forward.1} parent=1 // pred_check
      _
    $region19: #{mamba_block_forward.1} parent=1 // pred_check_branch
      %41 = sbr.rel (0) target = $region21
    $region20: #{mamba_block_forward.1} parent=1 // pred_region
      %42 = dma.done [#allocation6], 256
    $region21: #{mamba_block_forward.1} parent=1 // pred_fallthru
      _
    %v43 = vld [vmem:[#allocation2] sm:$0xff]
    %v44 = vld [vmem:[#allocation2 + $0x8] sm:$0xff]
    %v45 = vld [vmem:[#allocation5] sm:$0xff]
    %v46 = vld [vmem:[#allocation5 + $0x8] sm:$0xff]
    %v47 = vld [vmem:[%s2] sm:$0x1]
    %v49 = vlaneseq
    %v50 = vshrl.u32 %v49, 7
    %v51 = vsub.s32 0, %v50
    %v52 = vrot.slane %v47, %v51
    %vm54 = vcmask 130048
    %v56 = vsel %vm54, %v43, 0
    %v59 = vsel %vm54, %v44, 0
    %61 = vmatprep.subr.mxu0 0.0
    %62 = vmatpush1.msra.mxu0 0.0
    %63 = vmatprep.subr.mxu0 0.0
    %64 = vmatpush1.msra.mxu0 0.0
    %65 = vmatprep.subr.mxu0 0.0
    %66 = vmatpush1.msra.mxu0 0.0
    %67 = vmatprep.subr.mxu0 0.0
    %68 = vmatpush1.msra.mxu0 0.0
    %69 = vmatprep.subr.mxu0 0.0
    %70 = vmatpush1.msra.mxu0 0.0
    %71 = vmatprep.subr.mxu0 0.0
    %72 = vmatpush1.msra.mxu0 0.0
    %73 = vmatprep.subr.mxu0 0.0
    %74 = vmatpush1.msra.mxu0 0.0
    %75 = vmatprep.subr.mxu0 0.0
    %76 = vmatpush1.msra.mxu0 0.0
    %77 = vmatprep.subr.mxu0 0.0
    %78 = vmatpush1.msra.mxu0 0.0
    %79 = vmatprep.subr.mxu0 0.0
    %80 = vmatpush1.msra.mxu0 0.0
    %81 = vmatprep.subr.mxu0 0.0
    %82 = vmatpush1.msra.mxu0 0.0
    %83 = vmatprep.subr.mxu0 0.0
    %84 = vmatpush1.msra.mxu0 0.0
    %85 = vmatprep.subr.mxu0 0.0
    %86 = vmatpush1.msra.mxu0 0.0
    %87 = vmatprep.subr.mxu0 0.0
    %88 = vmatpush1.msra.mxu0 0.0
    %89 = vmatprep.subr.mxu0 0.0
    %90 = vmatpush1.msra.mxu0 %v46
    %91 = vmatprep.subr.mxu0 0.0
    %92 = vmatpush1.msra.mxu0 %v45
    %93 = vmatprep.subr.mxu0 0.0
    %94 = vmatpush2.msra.mxu0 0.0
    %95 = vmatprep.subr.mxu0 0.0
    %96 = vmatpush2.msra.mxu0 0.0
    %97 = vmatprep.subr.mxu0 0.0
    %98 = vmatpush2.msra.mxu0 0.0
    %99 = vmatprep.subr.mxu0 0.0
    %100 = vmatpush2.msra.mxu0 0.0
    %101 = vmatprep.subr.mxu0 0.0
    %102 = vmatpush2.msra.mxu0 0.0
    %103 = vmatprep.subr.mxu0 0.0
    %104 = vmatpush2.msra.mxu0 0.0
    %105 = vmatprep.subr.mxu0 0.0
    %106 = vmatpush2.msra.mxu0 0.0
    %107 = vmatprep.subr.mxu0 0.0
    %108 = vmatpush2.msra.mxu0 0.0
    %109 = vmatprep.subr.mxu0 0.0
    %110 = vmatpush2.msra.mxu0 0.0
    %111 = vmatprep.subr.mxu0 0.0
    %112 = vmatpush2.msra.mxu0 0.0
    %113 = vmatprep.subr.mxu0 0.0
    %114 = vmatpush2.msra.mxu0 0.0
    %115 = vmatprep.subr.mxu0 0.0
    %116 = vmatpush2.msra.mxu0 0.0
    %117 = vmatprep.subr.mxu0 0.0
    %118 = vmatpush2.msra.mxu0 0.0
    %119 = vmatprep.subr.mxu0 0.0
    %120 = vmatpush2.msra.mxu0 0.0
    %121 = vmatprep.subr.mxu0 0.0
    %122 = vmatpush2.msra.mxu0 0.0
    %123 = vmatprep.subr.mxu0 0.0
    %124 = vmatpush2.msra.mxu0 0.0
    %125 = vmatprep.mubr.f32.mxu0 0.0
    %126 = vmatmul.mubr.f32.gmra.mxu0 %v56
    %v127 = vpop.f32.mrf.mxu0
    %v128 = vadd.f32 %v52, %v127
    %v129 = vpop.f32.mrf.mxu0
    %130 = vmatprep.mubr.f32.mxu0 0.0
    %131 = vmatmul.mubr.f32.gmra.mxu0 %v59
    %v132 = vpop.f32.mrf.mxu0
    %v133 = vadd.f32 %v52, %v132
    %v134 = vpop.f32.mrf.mxu0
    %135 = vdwg.mxu0
    %v136 = vmax.f32 %v128, 0.0
    %v137 = vmax.f32 %v133, 0.0
    %vm138 = vcmask 261120
    %139 = vst.msk [vmem:[#allocation7] sm:$0xff] %vm138, %v136
    %140 = vst.msk [vmem:[#allocation7 + $0x8] sm:$0xff] %vm138, %v137
    // Predicated region
    $region22: #{mamba_block_forward.1} parent=1 // pred_check
      _
    $region23: #{mamba_block_forward.1} parent=1 // pred_check_branch
      %142 = sbr.rel (0) target = $region25
    $region24: #{mamba_block_forward.1} parent=1 // pred_region
      %s144 = ssub.s32 256, 256
      %145 = vsyncadd [#allocation4], %s144
      %s146 = sshll.u32 [#allocation7], 4
      %s147 = int_to_ptr.vmem [resolvable:$true] %s146
      %152 = dma.vmem_to_hbm [thread:$0]  %s147, 256, %s3, [#allocation4], 128, 128, 8
    $region25: #{mamba_block_forward.1} parent=1 // pred_fallthru
      _
    // Predicated region
    $region26: #{mamba_block_forward.1} parent=1 // pred_check
      _
    $region27: #{mamba_block_forward.1} parent=1 // pred_check_branch
      %154 = sbr.rel (0) target = $region29
    $region28: #{mamba_block_forward.1} parent=1 // pred_region
      %155 = dma.done [#allocation4], 256
    $region29: #{mamba_block_forward.1} parent=1 // pred_fallthru
      _
    %156 = vsyncpa [#allocation3], 1
    %157 = vsyncpa [#allocation6], 1
    %158 = vsyncpa [#allocation4], 1

</llo_original>
